<compile_context>
chip_gen: v7x
topology: tpu7x:2x2x1
jax: 0.10.0
libtpu: 0.0.40
codegen_flags: <defaults>
</compile_context>

<pallas_src>
import functools

import jax
import jax.numpy as jnp
from jax.experimental import pallas as pl
from jax.experimental.pallas import tpu as pltpu


def _cdiv(a, b):
    return (a + b - 1) // b


def _round_up(a, b):
    return _cdiv(a, b) * b


# ---------------------------------------------------------------------------
# Phase 1: f1 (1, L) row and f2 (L, 1) column, tiled over L.
# ---------------------------------------------------------------------------
def _fea2mp_vectors_kernel(x_ref, wf1_ref, wf2_ref, b_ref, f1_ref, f2_ref):
    # x_ref:   (C, tl)  slice of x in its native (C, L) layout (any float dtype)
    # wf1_ref: (1, C)   folded weight  conv2_1.w @ conv1.w
    # wf2_ref: (C, 1)   folded weight (conv2_2.w @ conv1.w)^T
    # b_ref:   (1, 2)   [conv2_1.bias, conv2_2.bias]
    # f1_ref:  (1, tl)  f1 slice (+ b1)
    # f2_ref:  (tl, 1)  f2 slice (+ b2)
    x = x_ref[...].astype(jnp.float32)                      # matches x.float()

    # f1 row: (1, C) @ (C, tl) -> (1, tl)
    f1_ref[...] = jax.lax.dot_general(
        wf1_ref[...], x, (((1,), (0,)), ((), ())),
        preferred_element_type=jnp.float32) + b_ref[:, 0:1]

    # f2 column: contract the C axis of x directly (transposed-LHS matmul,
    # no in-kernel transpose): (C, tl) . (C, 1) over C -> (tl, 1)
    f2_ref[...] = jax.lax.dot_general(
        x, wf2_ref[...], (((0,), (0,)), ((), ())),
        preferred_element_type=jnp.float32) + b_ref[:, 1:2]


# ---------------------------------------------------------------------------
# Phase 2: tiled broadcast-add over the (L, L) output.
# ---------------------------------------------------------------------------
def _bcast_add_kernel(f2_ref, f1_ref, out_ref, *, tn, single_col_block):
    # f2_ref:  (tm, 1)    f2 slice for this row tile (re-fetched only when i changes)
    # f1_ref:  (1, lp_n)  whole (padded) f1 row, VMEM-resident across the grid
    # out_ref: (tm, tn)   preds tile: out[i, j] = f2[i] + f1[j]
    if single_col_block:
        f1 = f1_ref[...]                                    # lp_n == tn: whole row
    else:
        # tn is a multiple of 128 here, so the dynamic lane slice is aligned.
        j0 = pl.multiple_of(pl.program_id(1) * tn, tn)
        f1 = f1_ref[:, pl.ds(j0, tn)]
    # Single fused broadcast-add + store: each output element touched once.
    out_ref[...] = (f2_ref[...] + f1).astype(out_ref.dtype)


def fea2mp_head_forward(x_ncl, w1, w21, b21, w22, b22):
    """x_ncl: (1, C, L) input (any float dtype); returns preds (L, L) float32."""
    assert x_ncl.shape[0] == 1, "squeeze(dim=0) semantics assume batch == 1"
    _, C, L = x_ncl.shape
    H = w1.shape[0]

    x_cl = x_ncl[0]                                          # (C, L), native layout

    # --- trace-time algebra: fold conv1 into conv2_{1,2} -------------------
    hi = jax.lax.Precision.HIGHEST
    w1_hc = jnp.reshape(w1, (H, C)).astype(jnp.float32)      # conv1.weight[:, :, 0]
    w21_row = jnp.reshape(w21, (1, H)).astype(jnp.float32)   # conv2_1.weight[0, :, 0]
    w22_row = jnp.reshape(w22, (1, H)).astype(jnp.float32)   # conv2_2.weight[0, :, 0]
    wf1 = jnp.matmul(w21_row, w1_hc, precision=hi)           # (1, C)
    wf2 = jnp.matmul(w22_row, w1_hc, precision=hi).T         # (C, 1)
    b = jnp.concatenate(
        [jnp.reshape(b21, (1, 1)), jnp.reshape(b22, (1, 1))],
        axis=1).astype(jnp.float32)                          # (1, 2)

    # --- phase 1: f1 (1, L) row and f2 (L, 1) column, tiled over L ----------
    # Keep the x block around <= 2 MiB and lane-aligned (or full extent).
    tl_cap = min(4096, max(128, (((2 << 20) // (4 * C)) // 128) * 128))
    tl = L if L <= tl_cap else tl_cap
    grid1 = (_cdiv(L, tl),)

    f1_row, f2_col = pl.pallas_call(
        _fea2mp_vectors_kernel,
        out_shape=(jax.ShapeDtypeStruct((1, L), jnp.float32),
                   jax.ShapeDtypeStruct((L, 1), jnp.float32)),
        grid=grid1,
        in_specs=[
            pl.BlockSpec((C, tl), lambda l: (0, l)),         # x slice
            pl.BlockSpec((1, C), lambda l: (0, 0)),          # wf1 (resident)
            pl.BlockSpec((C, 1), lambda l: (0, 0)),          # wf2 (resident)
            pl.BlockSpec((1, 2), lambda l: (0, 0)),          # biases (resident)
        ],
        out_specs=(pl.BlockSpec((1, tl), lambda l: (0, l)),
                   pl.BlockSpec((tl, 1), lambda l: (l, 0))),
        compiler_params=pltpu.CompilerParams(
            dimension_semantics=("parallel",)),
        cost_estimate=pl.CostEstimate(
            flops=4 * C * L + 2 * L,
            transcendentals=0,
            bytes_accessed=C * L * x_cl.dtype.itemsize + 4 * (2 * C + 2 + 2 * L)),
    )(x_cl, wf1, wf2, b)

    # --- phase 2: lane-dense tiled broadcast-add over the (L, L) output -----
    TM_MAX, TN_MAX = 1024, 2048                              # 8 MiB f32 output tile
    tm = L if L <= TM_MAX else TM_MAX
    tn = L if L <= TN_MAX else TN_MAX
    gi, gj = _cdiv(L, tm), _cdiv(L, tn)
    if gi == 1 and gj == 1:
        # Keep >= 2 programs on a parallel axis so both v7x TensorCores work.
        tm_half = _round_up(_cdiv(L, 2), 8)
        if tm_half < L:
            tm, gi = tm_half, _cdiv(L, tm_half)

    # f1 kept fully VMEM-resident; pad to a tile multiple so the in-kernel
    # dynamic slice is always in bounds on the ragged last column tile.
    lp_n = _round_up(L, tn)
    f1_res = f1_row if lp_n == L else jnp.pad(f1_row, ((0, 0), (0, lp_n - L)))

    out_tile_bytes = tm * tn * 4
    vmem_limit = (4 * out_tile_bytes          # double-buffered output + temp headroom
                  + 2 * 8 * lp_n * 4          # resident f1 (sublane-padded)
                  + 2 * tm * 128 * 4          # f2 blocks (lane-padded), double-buffered
                  + (2 << 20))                # slack for compiler internals
    vmem_limit = int(min(max(vmem_limit, 16 << 20), 44 << 20))

    kernel2 = functools.partial(_bcast_add_kernel, tn=tn, single_col_block=(gj == 1))

    preds = pl.pallas_call(
        kernel2,
        out_shape=jax.ShapeDtypeStruct((L, L), jnp.float32),
        grid=(gi, gj),
        in_specs=[
            pl.BlockSpec((tm, 1), lambda i, j: (i, 0)),      # f2 column slice
            pl.BlockSpec((1, lp_n), lambda i, j: (0, 0)),    # f1 row, VMEM-resident
        ],
        out_specs=pl.BlockSpec((tm, tn), lambda i, j: (i, j)),
        compiler_params=pltpu.CompilerParams(
            dimension_semantics=("parallel", "parallel"),
            vmem_limit_bytes=vmem_limit),
        cost_estimate=pl.CostEstimate(
            flops=L * L,
            transcendentals=0,
            bytes_accessed=4 * (L * L + 2 * L)),
    )(f2_col, f1_res)

    return preds


def _reference(x_ncl, w1, w21, b21, w22, b22):
    """Plain-JAX reference mirroring the PyTorch forward (eval mode)."""
    hi = jax.lax.Precision.HIGHEST
    x = x_ncl.astype(jnp.float32)                            # (1, C, L)
    seq_fts = jnp.einsum("oc,ncl->nol", w1, x, precision=hi)        # (1, H, L)
    f1 = jnp.einsum("o,nol->nl", w21, seq_fts, precision=hi) + b21  # (1, L)
    f2 = jnp.einsum("o,nol->nl", w22, seq_fts, precision=hi) + b22  # (1, L)
    logits = f1[:, None, :] + f2[:, :, None]                 # (1, L, L)
    return logits[0]                                         # (L, L)


if __name__ == "__main__":
    # Small shapes consistent with the module: batch=1, in_channel=4, out_sz=32, seq=16.
    in_channel, out_sz, L = 4, 32, 16
    dropout = 0.1  # unused at inference

    key = jax.random.PRNGKey(0)
    k_x, k_w1, k_w21, k_b21, k_w22, k_b22 = jax.random.split(key, 6)

    x = jax.random.normal(k_x, (1, in_channel, L), dtype=jnp.float32)

    # Deterministic synthetic parameters (shapes follow nn.Conv1d(..., kernel_size=1)).
    w1 = jax.random.normal(k_w1, (out_sz, in_channel), dtype=jnp.float32) * 0.1   # conv1.weight[:, :, 0]
    w21 = jax.random.normal(k_w21, (out_sz,), dtype=jnp.float32) * 0.1            # conv2_1.weight[0, :, 0]
    b21 = jax.random.normal(k_b21, (), dtype=jnp.float32) * 0.1                   # conv2_1.bias[0]
    w22 = jax.random.normal(k_w22, (out_sz,), dtype=jnp.float32) * 0.1            # conv2_2.weight[0, :, 0]
    b22 = jax.random.normal(k_b22, (), dtype=jnp.float32) * 0.1                   # conv2_2.bias[0]

    preds = fea2mp_head_forward(x, w1, w21, b21, w22, b22)
    preds = jax.block_until_ready(preds)

    ref = _reference(x, w1, w21, b21, w22, b22)
    assert preds.shape == (L, L)
    assert jnp.allclose(preds, ref, atol=1e-5, rtol=1e-5), "mismatch vs reference"

    print("KERNEL_OK")
</pallas_src>

<mosaic_0001>
module attributes {stable_mosaic.version = 11 : i64} {
  func.func @_fea2mp_vectors_kernel(%arg0: i32, %arg1: memref<4x16xf32, #tpu.memory_space<vmem>>, %arg2: memref<1x4xf32, #tpu.memory_space<vmem>>, %arg3: memref<4x1xf32, #tpu.memory_space<vmem>>, %arg4: memref<1x2xf32, #tpu.memory_space<vmem>>, %arg5: memref<1x16xf32, #tpu.memory_space<vmem>>, %arg6: memref<16x1xf32, #tpu.memory_space<vmem>>) attributes {dimension_semantics = [#tpu.dimension_semantics<parallel>], iteration_bounds = array<i64: 1>, scalar_prefetch = 0 : i64, scratch_operands = 0 : i64, tpu.core_type = #tpu.core_type<tc>, window_params = [{transform_indices = @transform_0, window_bounds = array<i64: 4, 16>}, {pipeline_mode = #tpu.pipeline_mode<synchronous>, transform_indices = @transform_1, window_bounds = array<i64: 1, 4>}, {pipeline_mode = #tpu.pipeline_mode<synchronous>, transform_indices = @transform_2, window_bounds = array<i64: 4, 1>}, {pipeline_mode = #tpu.pipeline_mode<synchronous>, transform_indices = @transform_3, window_bounds = array<i64: 1, 2>}, {transform_indices = @transform_4, window_bounds = array<i64: 1, 16>}, {transform_indices = @transform_5, window_bounds = array<i64: 16, 1>}]} {
    %c0 = arith.constant 0 : index
    %c0_0 = arith.constant 0 : index
    %0 = vector.load %arg1[%c0, %c0_0] : memref<4x16xf32, #tpu.memory_space<vmem>>, vector<4x16xf32>
    %c0_1 = arith.constant 0 : index
    %c0_2 = arith.constant 0 : index
    %1 = vector.load %arg2[%c0_1, %c0_2] : memref<1x4xf32, #tpu.memory_space<vmem>>, vector<1x4xf32>
    %cst = arith.constant dense<0.000000e+00> : vector<1x16xf32>
    %2 = tpu.matmul %1, %0, %cst {dimension_numbers = #tpu.dot_dimension_numbers<[1], [0], [0], [1], [0, 0, 1, 1], [], []>} : vector<1x4xf32>, vector<4x16xf32>, vector<1x16xf32> -> vector<1x16xf32>
    %c0_3 = arith.constant 0 : index
    %c0_4 = arith.constant 0 : index
    %3 = vector.load %arg4[%c0_3, %c0_4] : memref<1x2xf32, #tpu.memory_space<vmem>>, vector<1x1xf32>
    %4 = vector.broadcast %3 : vector<1x1xf32> to vector<1x16xf32>
    %5 = arith.addf %2, %4 : vector<1x16xf32>
    %c0_5 = arith.constant 0 : index
    %c0_6 = arith.constant 0 : index
    %6 = vector.load %arg5[%c0_5, %c0_6] : memref<1x16xf32, #tpu.memory_space<vmem>>, vector<1x16xf32>
    tpu.vector_store %arg5[%c0_5, %c0_6], %5 {strides = array<i32>} : memref<1x16xf32, #tpu.memory_space<vmem>>, vector<1x16xf32>,
    %c0_7 = arith.constant 0 : index
    %c0_8 = arith.constant 0 : index
    %7 = vector.load %arg3[%c0_7, %c0_8] : memref<4x1xf32, #tpu.memory_space<vmem>>, vector<4x1xf32>
    %cst_9 = arith.constant dense<0.000000e+00> : vector<16x1xf32>
    %8 = tpu.matmul %0, %7, %cst_9 {dimension_numbers = #tpu.dot_dimension_numbers<[0], [0], [1], [1], [0, 1, 1, 1], [], []>} : vector<4x16xf32>, vector<4x1xf32>, vector<16x1xf32> -> vector<16x1xf32>
    %c0_10 = arith.constant 0 : index
    %c1 = arith.constant 1 : index
    %9 = vector.load %arg4[%c0_10, %c1] : memref<1x2xf32, #tpu.memory_space<vmem>>, vector<1x1xf32>
    %10 = vector.broadcast %9 : vector<1x1xf32> to vector<16x1xf32>
    %11 = arith.addf %8, %10 : vector<16x1xf32>
    %c0_11 = arith.constant 0 : index
    %c0_12 = arith.constant 0 : index
    %12 = vector.load %arg6[%c0_11, %c0_12] : memref<16x1xf32, #tpu.memory_space<vmem>>, vector<16x1xf32>
    tpu.vector_store %arg6[%c0_11, %c0_12], %11 {strides = array<i32>} : memref<16x1xf32, #tpu.memory_space<vmem>>, vector<16x1xf32>,
    return
  }
  func.func @transform_0(%arg0: i32) -> (i32, i32) {
    %c0_i32 = arith.constant 0 : i32
    %c0_i32_0 = arith.constant 0 : i32
    return %c0_i32, %arg0 : i32, i32
  }
  func.func @transform_1(%arg0: i32) -> (i32, i32) {
    %c0_i32 = arith.constant 0 : i32
    %c0_i32_0 = arith.constant 0 : i32
    %c0_i32_1 = arith.constant 0 : i32
    return %c0_i32, %c0_i32_0 : i32, i32
  }
  func.func @transform_2(%arg0: i32) -> (i32, i32) {
    %c0_i32 = arith.constant 0 : i32
    %c0_i32_0 = arith.constant 0 : i32
    %c0_i32_1 = arith.constant 0 : i32
    return %c0_i32, %c0_i32_0 : i32, i32
  }
  func.func @transform_3(%arg0: i32) -> (i32, i32) {
    %c0_i32 = arith.constant 0 : i32
    %c0_i32_0 = arith.constant 0 : i32
    %c0_i32_1 = arith.constant 0 : i32
    return %c0_i32, %c0_i32_0 : i32, i32
  }
  func.func @transform_4(%arg0: i32) -> (i32, i32) {
    %c0_i32 = arith.constant 0 : i32
    %c0_i32_0 = arith.constant 0 : i32
    return %c0_i32, %arg0 : i32, i32
  }
  func.func @transform_5(%arg0: i32) -> (i32, i32) {
    %c0_i32 = arith.constant 0 : i32
    %c0_i32_0 = arith.constant 0 : i32
    return %arg0, %c0_i32 : i32, i32
  }
}

</mosaic_0001>

<llo_original>
// kernel: tpu_custom_call.1
$region0: #{tpu_custom_call.1}
  #allocation0 [shape = 'u32[]', space=smem, size = 0x4, offset = 0x4, fixed_abs, tag = 'smem constant byte address 0x4 - core index']
  #allocation1 [shape = 'u32[144,128]{1,0:T(1,128)}', space=vmem, size = 0x12000, scoped, tag = 'internal scratch']
  %s0 = inlined_call_operand.vmem [shape: f32[4,16], index: 0, kind: input, shape index: {}]
  %s1 = inlined_call_operand.vmem [shape: f32[1,4], index: 1, kind: input, shape index: {}]
  %s2 = inlined_call_operand.vmem [shape: f32[4,1], index: 2, kind: input, shape index: {}]
  %s3 = inlined_call_operand.vmem [shape: f32[1,2], index: 3, kind: input, shape index: {}]
  %s4 = inlined_call_operand.hbm [shape: f32[1,16], index: 4, kind: output, shape index: {0}]
  %s5 = inlined_call_operand.vmem [shape: f32[16,1], index: 5, kind: output, shape index: {1}]
  %6 = xla_tuple %s4, %s5
  %s7 = sld [smem:[#allocation0]]
  $region34: #{tpu_custom_call.1} parent=0
    _
  %s9 = ssub.s32 1, %s7
  %s10 = scalar_select 0, %s9, %s7
  $region1: #{tpu_custom_call.1} parent=0
    #allocation2 [shape = 'u8[512]{0}', space=vmem, size = 0x400, scoped, tag = 'output window, operand 0, single buffered']
    #allocation3 [shape = 's32[1]{0}', space=sflag, size = 0x4, scoped, tag = 'scoped memory for tpu_custom_call.1']
    %11 = vsyncpa [#allocation3], 0
    // Predicated region
    $region2: #{tpu_custom_call.1} parent=1 // pred_check
      _
    $region3: #{tpu_custom_call.1} parent=1 // pred_check_branch
      %13 = sbr.rel (0) target = $region5
    $region4: #{tpu_custom_call.1} parent=1 // pred_region
      _
    $region5: #{tpu_custom_call.1} parent=1 // pred_fallthru
      _
    // Predicated region
    $region6: #{tpu_custom_call.1} parent=1 // pred_check
      _
    $region7: #{tpu_custom_call.1} parent=1 // pred_check_branch
      %15 = sbr.rel (0) target = $region9
    $region8: #{tpu_custom_call.1} parent=1 // pred_region
      _
    $region9: #{tpu_custom_call.1} parent=1 // pred_fallthru
      _
    // Predicated region
    $region10: #{tpu_custom_call.1} parent=1 // pred_check
      _
    $region11: #{tpu_custom_call.1} parent=1 // pred_check_branch
      %17 = sbr.rel (0) target = $region13
    $region12: #{tpu_custom_call.1} parent=1 // pred_region
      _
    $region13: #{tpu_custom_call.1} parent=1 // pred_fallthru
      _
    // Predicated region
    $region14: #{tpu_custom_call.1} parent=1 // pred_check
      _
    $region15: #{tpu_custom_call.1} parent=1 // pred_check_branch
      %19 = sbr.rel (0) target = $region17
    $region16: #{tpu_custom_call.1} parent=1 // pred_region
      _
    $region17: #{tpu_custom_call.1} parent=1 // pred_fallthru
      _
    %v20 = vld [vmem:[%s0] sm:$0xf]
    %v21 = vld [vmem:[%s1] sm:$0x1]
    %v22 = vld [vmem:[%s3] sm:$0x1]
    %24 = vset.pattern.permute.xlu0 0
    %25 = vperm.xlu0 %24, %v22
    %v26 = vpop.permute.xlu0 %25
    %v28 = vlaneseq
    %v29 = vshrl.u32 %v28, 7
    %v30 = vsub.s32 0, %v29
    %v31 = vrot.slane %v26, %v30
    %vm32 = vcmask 31744
    %v34 = vsel %vm32, %v21, 0
    %vm36 = vcmask 1043456
    %v38 = vsel %vm36, %v20, 0
    %40 = vmatprep.subr.mxu0 0.0
    %41 = vmatpush1.msra.mxu0 %v38
    %42 = vmatprep.subr.mxu0 0.0
    %43 = vmatpush1.msra.mxu0 0.0
    %44 = vmatprep.subr.mxu0 0.0
    %45 = vmatpush1.msra.mxu0 0.0
    %46 = vmatprep.subr.mxu0 0.0
    %47 = vmatpush1.msra.mxu0 0.0
    %48 = vmatprep.subr.mxu0 0.0
    %49 = vmatpush1.msra.mxu0 0.0
    %50 = vmatprep.subr.mxu0 0.0
    %51 = vmatpush1.msra.mxu0 0.0
    %52 = vmatprep.subr.mxu0 0.0
    %53 = vmatpush1.msra.mxu0 0.0
    %54 = vmatprep.subr.mxu0 0.0
    %55 = vmatpush1.msra.mxu0 0.0
    %56 = vmatprep.subr.mxu0 0.0
    %57 = vmatpush1.msra.mxu0 0.0
    %58 = vmatprep.subr.mxu0 0.0
    %59 = vmatpush1.msra.mxu0 0.0
    %60 = vmatprep.subr.mxu0 0.0
    %61 = vmatpush1.msra.mxu0 0.0
    %62 = vmatprep.subr.mxu0 0.0
    %63 = vmatpush1.msra.mxu0 0.0
    %64 = vmatprep.subr.mxu0 0.0
    %65 = vmatpush1.msra.mxu0 0.0
    %66 = vmatprep.subr.mxu0 0.0
    %67 = vmatpush1.msra.mxu0 0.0
    %68 = vmatprep.subr.mxu0 0.0
    %69 = vmatpush1.msra.mxu0 0.0
    %70 = vmatprep.subr.mxu0 0.0
    %71 = vmatpush1.msra.mxu0 0.0
    %72 = vmatprep.subr.mxu0 0.0
    %73 = vmatpush1.msra.mxu0 0.0
    %74 = vmatprep.subr.mxu0 0.0
    %75 = vmatpush1.msra.mxu0 0.0
    %76 = vmatprep.subr.mxu0 0.0
    %77 = vmatpush1.msra.mxu0 0.0
    %78 = vmatprep.subr.mxu0 0.0
    %79 = vmatpush1.msra.mxu0 0.0
    %80 = vmatprep.subr.mxu0 0.0
    %81 = vmatpush1.msra.mxu0 0.0
    %82 = vmatprep.subr.mxu0 0.0
    %83 = vmatpush1.msra.mxu0 0.0
    %84 = vmatprep.subr.mxu0 0.0
    %85 = vmatpush1.msra.mxu0 0.0
    %86 = vmatprep.subr.mxu0 0.0
    %87 = vmatpush1.msra.mxu0 0.0
    %88 = vmatprep.subr.mxu0 0.0
    %89 = vmatpush1.msra.mxu0 0.0
    %90 = vmatprep.subr.mxu0 0.0
    %91 = vmatpush1.msra.mxu0 0.0
    %92 = vmatprep.subr.mxu0 0.0
    %93 = vmatpush1.msra.mxu0 0.0
    %94 = vmatprep.subr.mxu0 0.0
    %95 = vmatpush1.msra.mxu0 0.0
    %96 = vmatprep.subr.mxu0 0.0
    %97 = vmatpush1.msra.mxu0 0.0
    %98 = vmatprep.subr.mxu0 0.0
    %99 = vmatpush1.msra.mxu0 0.0
    %100 = vmatprep.subr.mxu0 0.0
    %101 = vmatpush1.msra.mxu0 0.0
    %102 = vmatprep.subr.mxu0 0.0
    %103 = vmatpush1.msra.mxu0 0.0
    %104 = vmatprep.mubr.f32.mxu0 0.0
    %105 = vmatmul.mubr.f32.gmra.mrb[0].mxu0 %v34
    %v106 = vpop.f32.mrb[0].mxu0
    %v107 = vadd.f32 %v31, %v106
    %v108 = vpop.f32.mrb[0].mxu0
    %109 = vdwg.mxu0
    %vm110 = vcmask 122880
    %111 = vst.msk [vmem:[#allocation2] sm:$0x1] %vm110, %v107
    %v112 = vld [vmem:[%s2] sm:$0xf]
    %v113 = vld [vmem:[%s3] sm:$0x1]
    %v115 = vlaneseq
    %v116 = vshrl.u32 %v115, 7
    %v117 = vsub.s32 0, %v116
    %v118 = vrot.slane %v113, %v117
    %119 = vxpose.xlu0.b32.start [1/16] %v20, 128
    %120 = vxpose.xlu0.b32.cont [2/16] 0.0, 128
    %121 = vxpose.xlu0.b32.cont [3/16] 0.0, 128
    %122 = vxpose.xlu0.b32.cont [4/16] 0.0, 128
    %123 = vxpose.xlu0.b32.cont [5/16] 0.0, 128
    %124 = vxpose.xlu0.b32.cont [6/16] 0.0, 128
    %125 = vxpose.xlu0.b32.cont [7/16] 0.0, 128
    %126 = vxpose.xlu0.b32.cont [8/16] 0.0, 128
    %127 = vxpose.xlu0.b32.cont [9/16] 0.0, 128
    %128 = vxpose.xlu0.b32.cont [10/16] 0.0, 128
    %129 = vxpose.xlu0.b32.cont [11/16] 0.0, 128
    %130 = vxpose.xlu0.b32.cont [12/16] 0.0, 128
    %131 = vxpose.xlu0.b32.cont [13/16] 0.0, 128
    %132 = vxpose.xlu0.b32.cont [14/16] 0.0, 128
    %133 = vxpose.xlu0.b32.cont [15/16] 0.0, 128
    %134 = vxpose.xlu0.b32.end [16/16] 0.0, 128
    %v135 = vpop.trf.xlu0
    %v136 = vpop.trf.xlu0
    %v137 = vpop.trf.xlu0
    %v138 = vpop.trf.xlu0
    %v139 = vpop.trf.xlu0
    %v140 = vpop.trf.xlu0
    %v141 = vpop.trf.xlu0
    %v142 = vpop.trf.xlu0
    %v143 = vpop.trf.xlu0
    %v144 = vpop.trf.xlu0
    %v145 = vpop.trf.xlu0
    %v146 = vpop.trf.xlu0
    %v147 = vpop.trf.xlu0
    %v148 = vpop.trf.xlu0
    %v149 = vpop.trf.xlu0
    %v150 = vpop.trf.xlu0
    %151 = vrot.lane.b32.xlu0 %v118, 127
    %v152 = vpop.permute.xlu0 %151
    %v155 = vsel %vm32, %v135, 0
    %v158 = vsel %vm32, %v136, 0
    %v161 = vsel %vm36, %v112, 0
    %163 = vmatprep.subr.mxu0 0.0
    %164 = vmatpush1.msra.mxu0 %v161
    %165 = vmatprep.subr.mxu0 0.0
    %166 = vmatpush1.msra.mxu0 0.0
    %167 = vmatprep.subr.mxu0 0.0
    %168 = vmatpush1.msra.mxu0 0.0
    %169 = vmatprep.subr.mxu0 0.0
    %170 = vmatpush1.msra.mxu0 0.0
    %171 = vmatprep.subr.mxu0 0.0
    %172 = vmatpush1.msra.mxu0 0.0
    %173 = vmatprep.subr.mxu0 0.0
    %174 = vmatpush1.msra.mxu0 0.0
    %175 = vmatprep.subr.mxu0 0.0
    %176 = vmatpush1.msra.mxu0 0.0
    %177 = vmatprep.subr.mxu0 0.0
    %178 = vmatpush1.msra.mxu0 0.0
    %179 = vmatprep.subr.mxu0 0.0
    %180 = vmatpush1.msra.mxu0 0.0
    %181 = vmatprep.subr.mxu0 0.0
    %182 = vmatpush1.msra.mxu0 0.0
    %183 = vmatprep.subr.mxu0 0.0
    %184 = vmatpush1.msra.mxu0 0.0
    %185 = vmatprep.subr.mxu0 0.0
    %186 = vmatpush1.msra.mxu0 0.0
    %187 = vmatprep.subr.mxu0 0.0
    %188 = vmatpush1.msra.mxu0 0.0
    %189 = vmatprep.subr.mxu0 0.0
    %190 = vmatpush1.msra.mxu0 0.0
    %191 = vmatprep.subr.mxu0 0.0
    %192 = vmatpush1.msra.mxu0 0.0
    %193 = vmatprep.subr.mxu0 0.0
    %194 = vmatpush1.msra.mxu0 0.0
    %195 = vmatprep.subr.mxu0 0.0
    %196 = vmatpush1.msra.mxu0 0.0
    %197 = vmatprep.subr.mxu0 0.0
    %198 = vmatpush1.msra.mxu0 0.0
    %199 = vmatprep.subr.mxu0 0.0
    %200 = vmatpush1.msra.mxu0 0.0
    %201 = vmatprep.subr.mxu0 0.0
    %202 = vmatpush1.msra.mxu0 0.0
    %203 = vmatprep.subr.mxu0 0.0
    %204 = vmatpush1.msra.mxu0 0.0
    %205 = vmatprep.subr.mxu0 0.0
    %206 = vmatpush1.msra.mxu0 0.0
    %207 = vmatprep.subr.mxu0 0.0
    %208 = vmatpush1.msra.mxu0 0.0
    %209 = vmatprep.subr.mxu0 0.0
    %210 = vmatpush1.msra.mxu0 0.0
    %211 = vmatprep.subr.mxu0 0.0
    %212 = vmatpush1.msra.mxu0 0.0
    %213 = vmatprep.subr.mxu0 0.0
    %214 = vmatpush1.msra.mxu0 0.0
    %215 = vmatprep.subr.mxu0 0.0
    %216 = vmatpush1.msra.mxu0 0.0
    %217 = vmatprep.subr.mxu0 0.0
    %218 = vmatpush1.msra.mxu0 0.0
    %219 = vmatprep.subr.mxu0 0.0
    %220 = vmatpush1.msra.mxu0 0.0
    %221 = vmatprep.subr.mxu0 0.0
    %222 = vmatpush1.msra.mxu0 0.0
    %223 = vmatprep.subr.mxu0 0.0
    %224 = vmatpush1.msra.mxu0 0.0
    %225 = vmatprep.subr.mxu0 0.0
    %226 = vmatpush1.msra.mxu0 0.0
    %227 = vmatprep.mubr.f32.mxu0 0.0
    %228 = vmatmul.mubr.f32.gmra.mrb[0].mxu0 %v155
    %v229 = vpop.f32.mrb[0].mxu0
    %v230 = vadd.f32 %v152, %v229
    %v231 = vpop.f32.mrb[0].mxu0
    %232 = vmatprep.mubr.f32.mxu0 0.0
    %233 = vmatmul.mubr.f32.gmra.mrb[0].mxu0 %v158
    %v234 = vpop.f32.mrb[0].mxu0
    %v235 = vadd.f32 %v152, %v234
    %v236 = vpop.f32.mrb[0].mxu0
    %237 = vdwg.mxu0
    %vm238 = vcmask 7168
    %239 = vst.msk [vmem:[%s5] sm:$0xff] %vm238, %v230
    %240 = vst.msk [vmem:[%s5 + $0x8] sm:$0xff] %vm238, %v235
    // Predicated region
    $region18: #{tpu_custom_call.1} parent=1 // pred_check
      _
    $region19: #{tpu_custom_call.1} parent=1 // pred_check_branch
      %242 = sbr.rel (0) target = $region21
    $region20: #{tpu_custom_call.1} parent=1 // pred_region
      %s244 = ssub.s32 16, 16
      %245 = vsyncadd [#allocation3], %s244
      %s247 = sshll.u32 [#allocation2], 4
      %s248 = int_to_ptr.vmem [resolvable:$true] %s247
      %250 = dma.vmem_to_hbm [thread:$0]  %s248, 16, %s4, [#allocation3]
    $region21: #{tpu_custom_call.1} parent=1 // pred_fallthru
      _
    // Predicated region
    $region22: #{tpu_custom_call.1} parent=1 // pred_check
      _
    $region23: #{tpu_custom_call.1} parent=1 // pred_check_branch
      %252 = sbr.rel (0) target = $region25
    $region24: #{tpu_custom_call.1} parent=1 // pred_region
      _
    $region25: #{tpu_custom_call.1} parent=1 // pred_fallthru
      _
    // Predicated region
    $region26: #{tpu_custom_call.1} parent=1 // pred_check
      _
    $region27: #{tpu_custom_call.1} parent=1 // pred_check_branch
      %254 = sbr.rel (0) target = $region29
    $region28: #{tpu_custom_call.1} parent=1 // pred_region
      %255 = dma.done [#allocation3], 16
    $region29: #{tpu_custom_call.1} parent=1 // pred_fallthru
      _
    // Predicated region
    $region30: #{tpu_custom_call.1} parent=1 // pred_check
      _
    $region31: #{tpu_custom_call.1} parent=1 // pred_check_branch
      %257 = sbr.rel (0) target = $region33
    $region32: #{tpu_custom_call.1} parent=1 // pred_region
      _
    $region33: #{tpu_custom_call.1} parent=1 // pred_fallthru
      _
    %258 = vsyncpa [#allocation3], 1

</llo_original>
